<compile_context>
chip_gen: v6e
topology: v6e:2x2x1
jax: 0.10.0
libtpu: 0.0.40
codegen_flags: <defaults>
</compile_context>

<pallas_src>
import functools

import jax
import jax.numpy as jnp
from jax.experimental import pallas as pl
from jax.experimental.pallas import tpu as pltpu


# ---------------------------------------------------------------------------
# Kernel
# ---------------------------------------------------------------------------
def _task_weighter_kernel(losses_ref, alpha_ref, out_ref):
    # losses_ref: SMEM (task_num,)      losses[0] = main, losses[1:] = aux
    # alpha_ref : SMEM (task_num - 1,)  per-aux-task weights (nn.Parameter alpha)
    # out_ref   : SMEM (1,)             weighted total loss
    task_num = losses_ref.shape[0]
    n_aux = task_num - 1

    # Two independent partial accumulators (even / odd aux index) to halve the
    # strict mul+add dependency chain on the scalar ALU.  Statically unrolled.
    acc0 = losses_ref[0]                # main loss seeds accumulator 0
    acc1 = jnp.float32(0.0)
    for i in range(n_aux):
        term = losses_ref[i + 1] * alpha_ref[i]
        if i % 2 == 0:
            acc0 = acc0 + term
        else:
            acc1 = acc1 + term
    out_ref[0] = acc0 + acc1


# ---------------------------------------------------------------------------
# Wrapper (+ custom_vjp so the op is trainable through jax.grad)
# ---------------------------------------------------------------------------
def _task_weighter_pallas(losses, alpha):
    """Raw pallas_call. losses: (task_num,) f32, alpha: (task_num-1,) f32."""
    # Hoisted dtype guard: never emit an astype HLO when inputs are already f32.
    if losses.dtype != jnp.float32:
        losses = losses.astype(jnp.float32)
    if alpha.dtype != jnp.float32:
        alpha = alpha.astype(jnp.float32)

    task_num = losses.shape[0]
    assert alpha.shape == (task_num - 1,), (losses.shape, alpha.shape)

    cost = pl.CostEstimate(
        flops=2 * task_num,
        transcendentals=0,
        bytes_accessed=4 * (task_num + (task_num - 1) + 1),
    )

    out = pl.pallas_call(
        _task_weighter_kernel,
        out_shape=jax.ShapeDtypeStruct((1,), jnp.float32),
        in_specs=[
            pl.BlockSpec(memory_space=pltpu.SMEM),  # losses (task_num,)
            pl.BlockSpec(memory_space=pltpu.SMEM),  # alpha  (task_num-1,)
        ],
        out_specs=pl.BlockSpec(memory_space=pltpu.SMEM),
        cost_estimate=cost,
    )(losses, alpha)
    # Return a 0-d scalar to match the module's semantics (scalar total loss);
    # the extract is a trivially-fused HLO.
    return out[0]


@jax.custom_vjp
def task_weighter_forward(losses, alpha):
    """Pallas equivalent of Task_Weighter.forward.

    Args:
      losses: (task_num,) float32. losses[0] is the main loss, losses[1:] are
              the auxiliary losses (mirrors the list of scalar loss tensors
              passed to the PyTorch module).
      alpha:  (task_num - 1,) float32 weights (the nn.Parameter).

    Returns:
      0-d float32 scalar: main_loss + sum(aux_losses * alpha).
    """
    return _task_weighter_pallas(losses, alpha)


def _task_weighter_fwd(losses, alpha):
    out = _task_weighter_pallas(losses, alpha)
    return out, (losses, alpha)


def _task_weighter_bwd(residuals, g):
    losses, alpha = residuals
    # d out / d losses = [1, alpha_0, ..., alpha_{n-2}];  d out / d alpha = losses[1:]
    ones = jnp.ones((1,), dtype=losses.dtype)
    d_losses = g * jnp.concatenate([ones, alpha.astype(losses.dtype)])
    d_alpha = g * losses[1:].astype(alpha.dtype)
    return d_losses, d_alpha


task_weighter_forward.defvjp(_task_weighter_fwd, _task_weighter_bwd)


def task_weighter_forward_fused(losses, alpha):
    """Recommended production path: pure-jnp expression that XLA fuses into
    adjacent HLOs, removing the custom-call boundary entirely."""
    return losses[0] + jnp.sum(losses[1:] * alpha)


# TODO(synk): the gradient-based reweighting methods (arml / gradnorm / ol_aux /
# cosine_similarity), the Momentum_Average / Variance_Estimator running state,
# and inject_grad_noise depend on torch.autograd.grad w.r.t. an external
# model's parameters plus stateful buffers; they are training-time glue, not a
# tensor hot path, and are not reproduced here.


if __name__ == "__main__":
    task_num = 5  # 1 main task + 4 auxiliary tasks

    key = jax.random.PRNGKey(0)
    # Deterministic example "losses" (scalars), as the module's forward expects.
    losses = jax.random.uniform(key, (task_num,), dtype=jnp.float32)

    # Parameter init matches torch: alpha = ones(task_num - 1)
    alpha = jnp.ones((task_num - 1,), dtype=jnp.float32)

    # Forward through the Pallas kernel.
    out = task_weighter_forward(losses, alpha)
    out = jax.block_until_ready(out)

    # Pure-JAX reference check of the forward semantics.
    ref = task_weighter_forward_fused(losses, alpha)
    assert jnp.allclose(out, ref, rtol=1e-6, atol=1e-6), (out, ref)

    # Gradient check (custom_vjp): d/d losses = [1, alpha...], d/d alpha = losses[1:]
    g_losses, g_alpha = jax.grad(task_weighter_forward, argnums=(0, 1))(losses, alpha)
    g_losses = jax.block_until_ready(g_losses)
    ref_g_losses = jnp.concatenate([jnp.ones((1,), jnp.float32), alpha])
    ref_g_alpha = losses[1:]
    assert jnp.allclose(g_losses, ref_g_losses, rtol=1e-6, atol=1e-6)
    assert jnp.allclose(g_alpha, ref_g_alpha, rtol=1e-6, atol=1e-6)

    print("KERNEL_OK")
</pallas_src>

<mosaic_0001>
module attributes {stable_mosaic.version = 11 : i64} {
  func.func @_task_weighter_kernel(%arg0: memref<5xf32, #tpu.memory_space<smem>>, %arg1: memref<4xf32, #tpu.memory_space<smem>>, %arg2: memref<1xf32, #tpu.memory_space<smem>>) attributes {dimension_semantics = [], scalar_prefetch = 0 : i64, scratch_operands = 0 : i64, tpu.core_type = #tpu.core_type<tc>} {
    %c0 = arith.constant 0 : index
    %0 = memref.load %arg0[%c0] : memref<5xf32, #tpu.memory_space<smem>>
    %c1 = arith.constant 1 : index
    %1 = memref.load %arg0[%c1] : memref<5xf32, #tpu.memory_space<smem>>
    %c0_0 = arith.constant 0 : index
    %2 = memref.load %arg1[%c0_0] : memref<4xf32, #tpu.memory_space<smem>>
    %3 = arith.mulf %1, %2 : f32
    %4 = arith.addf %0, %3 : f32
    %c2 = arith.constant 2 : index
    %5 = memref.load %arg0[%c2] : memref<5xf32, #tpu.memory_space<smem>>
    %c1_1 = arith.constant 1 : index
    %6 = memref.load %arg1[%c1_1] : memref<4xf32, #tpu.memory_space<smem>>
    %7 = arith.mulf %5, %6 : f32
    %cst = arith.constant 0.000000e+00 : f32
    %8 = arith.addf %cst, %7 : f32
    %c3 = arith.constant 3 : index
    %9 = memref.load %arg0[%c3] : memref<5xf32, #tpu.memory_space<smem>>
    %c2_2 = arith.constant 2 : index
    %10 = memref.load %arg1[%c2_2] : memref<4xf32, #tpu.memory_space<smem>>
    %11 = arith.mulf %9, %10 : f32
    %12 = arith.addf %4, %11 : f32
    %c4 = arith.constant 4 : index
    %13 = memref.load %arg0[%c4] : memref<5xf32, #tpu.memory_space<smem>>
    %c3_3 = arith.constant 3 : index
    %14 = memref.load %arg1[%c3_3] : memref<4xf32, #tpu.memory_space<smem>>
    %15 = arith.mulf %13, %14 : f32
    %16 = arith.addf %8, %15 : f32
    %17 = arith.addf %12, %16 : f32
    %c0_4 = arith.constant 0 : index
    %18 = memref.load %arg2[%c0_4] : memref<1xf32, #tpu.memory_space<smem>>
    memref.store %17, %arg2[%c0_4] : memref<1xf32, #tpu.memory_space<smem>>
    return
  }
}

</mosaic_0001>

<llo_original>
// kernel: tpu_custom_call.1
$region0: #{tpu_custom_call.1}
  #allocation0 [shape = 'u32[]', space=smem, size = 0x4, offset = 0x4, fixed_abs, tag = 'smem constant byte address 0x4 - core index']
  #allocation1 [shape = 'u32[144,128]{1,0:T(1,128)}', space=vmem, size = 0x12000, scoped, tag = 'internal scratch']
  %s0 = inlined_call_operand.hbm [shape: f32[5], index: 0, kind: input, shape index: {}]
  %s1 = inlined_call_operand.vmem [shape: f32[4], index: 1, kind: input, shape index: {}]
  %s2 = inlined_call_operand.hbm [shape: f32[1], index: 2, kind: output, shape index: {}]
  %s3 = sld [smem:[#allocation0]]
  $region26: #{tpu_custom_call.1} parent=0
    _
  %s5 = ssub.s32 1, %s3
  %s6 = scalar_select 0, %s5, %s3
  $region1: #{tpu_custom_call.1} parent=0
    #allocation2 [shape = 'u8[512]{0}', space=smem, size = 0x200, scoped, tag = 'input window, operand 0, single buffered']
    #allocation3 [shape = 's32[1]{0}', space=sflag, size = 0x4, scoped, tag = 'scoped memory for tpu_custom_call.1']
    #allocation4 [shape = 's32[1]{0}', space=sflag, size = 0x4, scoped, tag = 'scoped memory for tpu_custom_call.1']
    #allocation5 [shape = 's32[1]{0}', space=sflag, size = 0x4, scoped, tag = 'scoped memory for tpu_custom_call.1']
    #allocation6 [shape = 'u8[512]{0}', space=smem, size = 0x200, scoped, tag = 'input window, operand 1, single buffered']
    #allocation7 [shape = 'u8[512]{0}', space=smem, size = 0x200, scoped, tag = 'output window, operand 0, single buffered']
    %7 = vsyncpa [#allocation3], 0
    %8 = vsyncpa [#allocation5], 0
    %9 = vsyncpa [#allocation4], 0
    // Predicated region
    $region2: #{tpu_custom_call.1} parent=1 // pred_check
      _
    $region3: #{tpu_custom_call.1} parent=1 // pred_check_branch
      %11 = sbr.rel (0) target = $region5
    $region4: #{tpu_custom_call.1} parent=1 // pred_region
      %s13 = ssub.s32 16, 16
      %14 = vsyncadd [#allocation3], %s13
      %17 = dma.hbm_to_smem %s0, 16, [#allocation2], [#allocation3]
    $region5: #{tpu_custom_call.1} parent=1 // pred_fallthru
      _
    // Predicated region
    $region6: #{tpu_custom_call.1} parent=1 // pred_check
      _
    $region7: #{tpu_custom_call.1} parent=1 // pred_check_branch
      %19 = sbr.rel (0) target = $region9
    $region8: #{tpu_custom_call.1} parent=1 // pred_region
      %s21 = ssub.s32 16, 16
      %22 = vsyncadd [#allocation5], %s21
      %s24 = sshll.u32 %s1, 4
      %s25 = int_to_ptr.vmem [resolvable:$true] %s24
      %27 = dma.vmem_to_smem %s25, 16, [#allocation6], [#allocation5]
    $region9: #{tpu_custom_call.1} parent=1 // pred_fallthru
      _
    // Predicated region
    $region10: #{tpu_custom_call.1} parent=1 // pred_check
      _
    $region11: #{tpu_custom_call.1} parent=1 // pred_check_branch
      %29 = sbr.rel (0) target = $region13
    $region12: #{tpu_custom_call.1} parent=1 // pred_region
      %30 = dma.done [#allocation3], 16
    $region13: #{tpu_custom_call.1} parent=1 // pred_fallthru
      _
    // Predicated region
    $region14: #{tpu_custom_call.1} parent=1 // pred_check
      _
    $region15: #{tpu_custom_call.1} parent=1 // pred_check_branch
      %32 = sbr.rel (0) target = $region17
    $region16: #{tpu_custom_call.1} parent=1 // pred_region
      %33 = dma.done [#allocation5], 16
    $region17: #{tpu_custom_call.1} parent=1 // pred_fallthru
      _
    %34 = sfence
    %s35 = sld [smem:[#allocation2]]
    %s36 = sld [smem:[#allocation2 + $0x1]]
    %s37 = sld [smem:[#allocation6]]
    %s38 = smul.f32 %s36, %s37
    %s39 = sadd.f32 %s35, %s38
    %s40 = sld [smem:[#allocation2 + $0x2]]
    %s41 = sld [smem:[#allocation6 + $0x1]]
    %s42 = smul.f32 %s40, %s41
    %s43 = sadd.f32 %s42, 0.0
    %s44 = sld [smem:[#allocation2 + $0x3]]
    %s45 = sld [smem:[#allocation6 + $0x2]]
    %s46 = smul.f32 %s44, %s45
    %s47 = sadd.f32 %s39, %s46
    %s48 = sld [smem:[#allocation2 + $0x4]]
    %s49 = sld [smem:[#allocation6 + $0x3]]
    %s50 = smul.f32 %s48, %s49
    %s51 = sadd.f32 %s43, %s50
    %s52 = sadd.f32 %s47, %s51
    %s53 = scalar_lea.smem [#allocation7], 0
    %54 = sst [smem:[%s53]] %s52
    // Predicated region
    $region18: #{tpu_custom_call.1} parent=1 // pred_check
      _
    $region19: #{tpu_custom_call.1} parent=1 // pred_check_branch
      %56 = sbr.rel (0) target = $region21
    $region20: #{tpu_custom_call.1} parent=1 // pred_region
      %s58 = ssub.s32 16, 16
      %59 = vsyncadd [#allocation4], %s58
      %62 = dma.smem_to_hbm [#allocation7], 16, %s2, [#allocation4]
    $region21: #{tpu_custom_call.1} parent=1 // pred_fallthru
      _
    // Predicated region
    $region22: #{tpu_custom_call.1} parent=1 // pred_check
      _
    $region23: #{tpu_custom_call.1} parent=1 // pred_check_branch
      %64 = sbr.rel (0) target = $region25
    $region24: #{tpu_custom_call.1} parent=1 // pred_region
      %65 = dma.done [#allocation4], 16
    $region25: #{tpu_custom_call.1} parent=1 // pred_fallthru
      _
    %66 = sfence
    %67 = vsyncpa [#allocation3], 1
    %68 = vsyncpa [#allocation4], 1
    %69 = vsyncpa [#allocation5], 1

</llo_original>
